<compile_context>
chip_gen: v7x
topology: tpu7x:2x2x1
jax: 0.10.0
libtpu: 0.0.40
codegen_flags: <defaults>
</compile_context>

<pallas_src>
import jax
import jax.numpy as jnp
from jax import lax
from jax.experimental import pallas as pl
from jax.experimental.pallas import tpu as pltpu


def _round_up(x, m):
    return (x + m - 1) // m * m


def _mlp_kernel(x_ref, w_ref, b_ref, o_ref):
    # x_ref: (C, tm) activation tile, channels on sublanes (transpose fused)
    # w_ref: (C, tn) weight tile; b_ref: (1, tn) bias; o_ref: (tm, tn) output
    acc = lax.dot_general(
        x_ref[...],
        w_ref[...],
        dimension_numbers=(((0,), (0,)), ((), ())),  # contract over C
        preferred_element_type=jnp.float32,
    )
    # f32 epilogue (v5e VPU has no bf16); single cast at the store.
    o_ref[...] = (acc + b_ref[...].astype(jnp.float32)).astype(o_ref.dtype)


def _mlp_kernel_ktiled(x_ref, w_ref, b_ref, o_ref, acc_ref):
    # Same as above but with a reduction grid axis over C and an f32 VMEM
    # accumulator (guarded fallback for large C).
    k = pl.program_id(3)

    @pl.when(k == 0)
    def _():
        acc_ref[...] = jnp.zeros_like(acc_ref)

    acc_ref[...] += lax.dot_general(
        x_ref[...],
        w_ref[...],
        dimension_numbers=(((0,), (0,)), ((), ())),
        preferred_element_type=jnp.float32,
    )

    @pl.when(k == pl.num_programs(3) - 1)
    def _():
        o_ref[...] = (acc_ref[...] + b_ref[...].astype(jnp.float32)).astype(
            o_ref.dtype
        )


def mlp_forward(
    x_nchw,
    w,
    b,
    *,
    out_dtype=None,
    tm_target=1024,
    tn_target=None,
    tk_target=256,
    force_k_tiling=False,
):
    """MLP forward.  x_nchw: (B, C, H, W); w: (C, E); b: (E,) -> (B, H*W, E)."""
    B, C, H, W = x_nchw.shape
    Cw, E = w.shape
    assert Cw == C, (Cw, C)
    HW = H * W
    out_dtype = jnp.dtype(out_dtype or x_nchw.dtype)
    in_b = jnp.dtype(x_nchw.dtype).itemsize
    w_b = jnp.dtype(w.dtype).itemsize
    out_b = out_dtype.itemsize

    # Free reshape only — no transpose, no pad of the activation.
    x = x_nchw.reshape(B, C, HW)

    # ---------------- tile selection -----------------------------------------
    VMEM_TILE_CAP = 24 << 20  # double-buffered tile footprint cap (v7x-safe)

    e_lane = _round_up(E, 128)
    if tn_target is None:
        # Keep the whole (padded) weight resident when it is small: weight and
        # bias are DMA'd once and the output writeback is one contiguous slab.
        tn = e_lane if C * e_lane * w_b <= (4 << 20) else min(512, e_lane)
    else:
        tn = min(_round_up(tn_target, 128), e_lane)

    tm = min(_round_up(tm_target, 128), _round_up(HW, 128))
    # v7x has 2 TensorCores: make sure the parallel axes have >= 2 programs.
    while B * pl.cdiv(HW, tm) < 2 and tm > 128:
        tm = max(128, _round_up(pl.cdiv(tm, 2), 128))

    def footprint(tm_, tn_, kc, k_tiled):
        fp = 2 * (kc * tm_ * in_b + kc * tn_ * w_b + tn_ * w_b + tm_ * tn_ * out_b)
        return fp + (tm_ * tn_ * 4 if k_tiled else 0)

    # Shrink tm, then tn, while the full-C footprint does not fit.
    while footprint(tm, tn, C, False) > VMEM_TILE_CAP and tm > 128:
        tm = max(128, _round_up(pl.cdiv(tm, 2), 128))
    while footprint(tm, tn, C, False) > VMEM_TILE_CAP and tn > 128:
        tn = max(128, _round_up(pl.cdiv(tn, 2), 128))

    k_tiled = force_k_tiling or footprint(tm, tn, C, False) > VMEM_TILE_CAP

    # Tiny pads only: weight/bias over E so no OOB weight columns are read.
    e_pad = pl.cdiv(E, tn) * tn
    if e_pad != E:
        w = jnp.pad(w, ((0, 0), (0, e_pad - E)))
        b = jnp.pad(b, ((0, e_pad - E),))
    b_row = b.reshape(1, e_pad)

    cost = pl.CostEstimate(
        flops=2 * B * HW * C * E,
        transcendentals=0,
        bytes_accessed=B * C * HW * in_b
        + C * e_pad * w_b
        + e_pad * w_b
        + B * HW * E * out_b,
    )
    out_shape = jax.ShapeDtypeStruct((B, HW, E), out_dtype)

    if not k_tiled:
        vmem_limit = int(min(max(2 * footprint(tm, tn, C, False), 8 << 20), 32 << 20))
        grid = (B, pl.cdiv(HW, tm), pl.cdiv(E, tn))
        return pl.pallas_call(
            _mlp_kernel,
            out_shape=out_shape,
            grid_spec=pltpu.PrefetchScalarGridSpec(
                num_scalar_prefetch=0,
                grid=grid,
                in_specs=[
                    # activation: full C, tm-wide token window (tokens on lanes)
                    pl.BlockSpec((None, C, tm), lambda bi, i, j: (bi, 0, i)),
                    # weight column block (constant when E fits in one block)
                    pl.BlockSpec((C, tn), lambda bi, i, j: (0, j)),
                    # bias column block
                    pl.BlockSpec((1, tn), lambda bi, i, j: (0, j)),
                ],
                out_specs=pl.BlockSpec(
                    (None, tm, tn), lambda bi, i, j: (bi, i, j)
                ),
            ),
            compiler_params=pltpu.CompilerParams(
                dimension_semantics=("parallel", "parallel", "parallel"),
                vmem_limit_bytes=vmem_limit,
            ),
            cost_estimate=cost,
        )(x, w, b_row)

    # ---------------- guarded K(C)-tiling fallback (large C) -----------------
    tk = min(_round_up(tk_target, 128), _round_up(C, 128))
    while footprint(tm, tn, tk, True) > VMEM_TILE_CAP and tm > 128:
        tm = max(128, _round_up(pl.cdiv(tm, 2), 128))
    c_pad = pl.cdiv(C, tk) * tk
    if c_pad != C:
        # Rare fallback: zero-pad the reduction dim of x and w so partial K
        # blocks contribute exactly zero (costs one extra pass over x, only
        # when C is both large and not a multiple of tk).
        x = jnp.pad(x, ((0, 0), (0, c_pad - C), (0, 0)))
        w = jnp.pad(w, ((0, c_pad - C), (0, 0)))
    vmem_limit = int(min(max(2 * footprint(tm, tn, tk, True), 8 << 20), 32 << 20))
    grid = (B, pl.cdiv(HW, tm), pl.cdiv(E, tn), pl.cdiv(c_pad, tk))
    return pl.pallas_call(
        _mlp_kernel_ktiled,
        out_shape=out_shape,
        grid_spec=pltpu.PrefetchScalarGridSpec(
            num_scalar_prefetch=0,
            grid=grid,
            in_specs=[
                pl.BlockSpec((None, tk, tm), lambda bi, i, j, k: (bi, k, i)),
                pl.BlockSpec((tk, tn), lambda bi, i, j, k: (k, j)),
                pl.BlockSpec((1, tn), lambda bi, i, j, k: (0, j)),
            ],
            out_specs=pl.BlockSpec(
                (None, tm, tn), lambda bi, i, j, k: (bi, i, j)
            ),
            scratch_shapes=[pltpu.VMEM((tm, tn), jnp.float32)],
        ),
        compiler_params=pltpu.CompilerParams(
            dimension_semantics=("parallel", "parallel", "parallel", "arbitrary"),
            vmem_limit_bytes=vmem_limit,
        ),
        cost_estimate=cost,
    )(x, w, b_row)


if __name__ == "__main__":
    key = jax.random.PRNGKey(0)
    kx, kw, kb, kx2, kw2, kb2 = jax.random.split(key, 6)

    # ---- main test: shapes consistent with the module forward ---------------
    B, C, H, W = 2, 4, 16, 16        # input_dim = C = 4
    E = 32                           # embed_dim = 32

    x = jax.random.normal(kx, (B, C, H, W), dtype=jnp.float32)
    bound = 1.0 / float(C) ** 0.5    # nn.Linear default init range
    w = jax.random.uniform(kw, (C, E), minval=-bound, maxval=bound,
                           dtype=jnp.float32)
    b = jax.random.uniform(kb, (E,), minval=-bound, maxval=bound,
                           dtype=jnp.float32)

    out = jax.block_until_ready(mlp_forward(x, w, b))
    x_tok = jnp.transpose(x.reshape(B, C, H * W), (0, 2, 1))
    ref = x_tok @ w + b
    assert out.shape == (B, H * W, E), out.shape
    assert jnp.allclose(out, ref, atol=1e-5, rtol=1e-5)

    # ---- secondary test: exercise the guarded K(C)-tiling fallback ----------
    B2, C2, H2, W2, E2 = 1, 320, 8, 8, 48
    x_k = jax.random.normal(kx2, (B2, C2, H2, W2), dtype=jnp.float32)
    bound2 = 1.0 / float(C2) ** 0.5
    w_k = jax.random.uniform(kw2, (C2, E2), minval=-bound2, maxval=bound2,
                             dtype=jnp.float32)
    b_k = jax.random.uniform(kb2, (E2,), minval=-bound2, maxval=bound2,
                             dtype=jnp.float32)

    out_k = jax.block_until_ready(
        mlp_forward(x_k, w_k, b_k, force_k_tiling=True, tk_target=128))
    ref_k = jnp.transpose(x_k.reshape(B2, C2, H2 * W2), (0, 2, 1)) @ w_k + b_k
    assert out_k.shape == (B2, H2 * W2, E2), out_k.shape
    assert jnp.allclose(out_k, ref_k, atol=1e-4, rtol=1e-4)

    print("KERNEL_OK")
</pallas_src>

<mosaic_0001>
module attributes {stable_mosaic.version = 11 : i64} {
  func.func @_mlp_kernel(%arg0: i32, %arg1: i32, %arg2: i32, %arg3: memref<1x4x256xf32, #tpu.memory_space<vmem>>, %arg4: memref<4x128xf32, #tpu.memory_space<vmem>>, %arg5: memref<1x128xf32, #tpu.memory_space<vmem>>, %arg6: memref<1x256x128xf32, #tpu.memory_space<vmem>>) attributes {dimension_semantics = [#tpu.dimension_semantics<parallel>, #tpu.dimension_semantics<parallel>, #tpu.dimension_semantics<parallel>], iteration_bounds = array<i64: 2, 1, 1>, scalar_prefetch = 0 : i64, scratch_operands = 0 : i64, tpu.core_type = #tpu.core_type<tc>, window_params = [{transform_indices = @transform_0, window_bounds = array<i64: 1, 4, 256>}, {transform_indices = @transform_1, window_bounds = array<i64: 4, 128>}, {transform_indices = @transform_2, window_bounds = array<i64: 1, 128>}, {transform_indices = @transform_3, window_bounds = array<i64: 1, 256, 128>}]} {
    %c0 = arith.constant 0 : index
    %c0_0 = arith.constant 0 : index
    %c0_1 = arith.constant 0 : index
    %0 = vector.load %arg3[%c0, %c0_0, %c0_1] : memref<1x4x256xf32, #tpu.memory_space<vmem>>, vector<1x4x256xf32>
    %1 = vector.shape_cast %0 : vector<1x4x256xf32> to vector<4x256xf32>
    %c0_2 = arith.constant 0 : index
    %c0_3 = arith.constant 0 : index
    %2 = vector.load %arg4[%c0_2, %c0_3] : memref<4x128xf32, #tpu.memory_space<vmem>>, vector<4x128xf32>
    %cst = arith.constant dense<0.000000e+00> : vector<256x128xf32>
    %3 = tpu.matmul %1, %2, %cst {dimension_numbers = #tpu.dot_dimension_numbers<[0], [0], [1], [1], [0, 1, 1, 1], [], []>} : vector<4x256xf32>, vector<4x128xf32>, vector<256x128xf32> -> vector<256x128xf32>
    %c0_4 = arith.constant 0 : index
    %c0_5 = arith.constant 0 : index
    %4 = vector.load %arg5[%c0_4, %c0_5] : memref<1x128xf32, #tpu.memory_space<vmem>>, vector<1x128xf32>
    %5 = vector.broadcast %4 : vector<1x128xf32> to vector<256x128xf32>
    %6 = arith.addf %3, %5 : vector<256x128xf32>
    %c0_6 = arith.constant 0 : index
    %c0_7 = arith.constant 0 : index
    %c0_8 = arith.constant 0 : index
    %7 = vector.load %arg6[%c0_6, %c0_7, %c0_8] : memref<1x256x128xf32, #tpu.memory_space<vmem>>, vector<1x256x128xf32>
    %8 = vector.shape_cast %7 : vector<1x256x128xf32> to vector<256x128xf32>
    %9 = vector.shape_cast %6 : vector<256x128xf32> to vector<1x256x128xf32>
    tpu.vector_store %arg6[%c0_6, %c0_7, %c0_8], %9 {strides = array<i32>} : memref<1x256x128xf32, #tpu.memory_space<vmem>>, vector<1x256x128xf32>,
    return
  }
  func.func @transform_0(%arg0: i32, %arg1: i32, %arg2: i32) -> (i32, i32, i32) {
    %c0_i32 = arith.constant 0 : i32
    %c0_i32_0 = arith.constant 0 : i32
    return %arg0, %c0_i32, %arg1 : i32, i32, i32
  }
  func.func @transform_1(%arg0: i32, %arg1: i32, %arg2: i32) -> (i32, i32) {
    %c0_i32 = arith.constant 0 : i32
    %c0_i32_0 = arith.constant 0 : i32
    return %c0_i32, %arg2 : i32, i32
  }
  func.func @transform_2(%arg0: i32, %arg1: i32, %arg2: i32) -> (i32, i32) {
    %c0_i32 = arith.constant 0 : i32
    %c0_i32_0 = arith.constant 0 : i32
    return %c0_i32, %arg2 : i32, i32
  }
  func.func @transform_3(%arg0: i32, %arg1: i32, %arg2: i32) -> (i32, i32, i32) {
    %c0_i32 = arith.constant 0 : i32
    return %arg0, %arg1, %arg2 : i32, i32, i32
  }
}

</mosaic_0001>

<llo_original>
// kernel: tpu_custom_call.1
$region0: #{tpu_custom_call.1}
  #allocation0 [shape = 'u32[]', space=smem, size = 0x4, offset = 0x4, fixed_abs, tag = 'smem constant byte address 0x4 - core index']
  #allocation1 [shape = 'u32[144,128]{1,0:T(1,128)}', space=vmem, size = 0x12000, scoped, tag = 'internal scratch']
  %s0 = inlined_call_operand.hbm [shape: f32[2,4,256], index: 0, kind: input, shape index: {}]
  %s1 = inlined_call_operand.hbm [shape: f32[4,128], index: 1, kind: input, shape index: {}]
  %s2 = inlined_call_operand.vmem [shape: f32[1,128], index: 2, kind: input, shape index: {}]
  %s3 = inlined_call_operand.vmem [shape: f32[2,256,32], index: 3, kind: output, shape index: {}]
  %s4 = sld [smem:[#allocation0]]
  $region53: #{tpu_custom_call.1} parent=0
    _
  %s6 = ssub.s32 1, %s4
  %s7 = scalar_select 0, %s6, %s4
  $region1: #{tpu_custom_call.1} parent=0
    #allocation2 [shape = 'u8[8192]{0}', space=vmem, size = 0x2000, scoped, tag = 'input window, operand 0']
    #allocation3 [shape = 's32[2]{0}', space=sflag, size = 0x8, scoped, tag = 'scoped memory for tpu_custom_call.1']
    #allocation4 [shape = 'u8[2048]{0}', space=vmem, size = 0x800, scoped, tag = 'input window, operand 1, single buffered']
    #allocation5 [shape = 's32[1]{0}', space=sflag, size = 0x4, scoped, tag = 'scoped memory for tpu_custom_call.1']
    %8 = vsyncpa [#allocation3], 0
    %s9 = scalar_lea.sflag [#allocation3], 1
    %10 = vsyncpa %s9, 0
    %11 = vsyncpa [#allocation5], 0
    loop: start=0, step=1, limit=4
    $region2: #{tpu_custom_call.1} parent=1 // loop_pre_header
      _
    $region3: #{tpu_custom_call.1} parent=1 // loop_header
      %s13 = sphi 0, %s17
      %p14 = scmp.ge.s32.totalorder %s13, 4
      %s20 = sphi 0, %s39
      %s21 = sphi 0, %s35
      %s22 = sphi 0, %s31
      %s23 = sphi 0, %s20
      %s24 = sphi 0, %s21
      %s25 = sphi 0, %s22
      %s26 = sphi 0, %s23
      %s27 = sphi 0, %s24
      %s28 = sphi 0, %s25
      %s44 = sphi 0, %s46
      %s47 = sphi 0, %s44
      %s48 = sphi 0, %s47
      %s64 = sphi 0, %s48
      %s70 = sphi 0, %s72
      %s73 = sphi 0, %s70
      %s74 = sphi 0, %s73
      %s90 = sphi 0, %s74
      %s96 = sphi 0, %s98
      %s99 = sphi 0, %s96
      %s100 = sphi 0, %s99
      %s116 = sphi 0, %s100
      %s126 = sphi 0, %s128
      %s129 = sphi 0, %s126
      %s130 = sphi 0, %s129
      %s146 = sphi 0, %s130
    $region4: #{tpu_custom_call.1} parent=1 // loop_header_branch
      %16 = sbr.rel (%p14) target = $region8
    $region5: #{tpu_custom_call.1} parent=1 // loop_body
      %s18 = ssub.s32 %s13, 1
      %s19 = ssub.s32 %s13, 2
      %s29 = sadd.s32 1, %s22
      %p30 = scmp.ge.s32.totalorder %s29, 1
      %s31 = scalar_select %p30, 0, %s29
      %s32 = sadd.s32 1, %s21
      %s33 = scalar_select %p30, %s32, %s21
      %p34 = scmp.ge.s32.totalorder %s33, 1
      %s35 = scalar_select %p34, 0, %s33
      %s36 = sadd.s32 1, %s20
      %s37 = scalar_select %p34, %s36, %s20
      %p38 = scmp.ge.s32.totalorder %s37, 2
      %s39 = scalar_select %p38, 0, %s37
      %s40 = ssub.s32 %s20, %s39
      %s41 = ssub.s32 %s21, %s35
      %s42 = sor.u32 %s40, %s41
      %p43 = scmp.eq.s32.totalorder %s42, 0
      %s45 = sadd.s32 %s44, 1
      %s46 = scalar_select %p43, %s44, %s45
      %p49 = pneg %p43
      %p50 = scmp.eq.s32.totalorder %s13, 1
      %p51 = por %p49, %p50
      %p52 = scmp.ne.s32.totalorder %s44, %s47
      %p53 = scmp.eq.s32.totalorder %s13, 0
      %p54 = por %p52, %p53
      %p55 = scmp.ne.s32.totalorder %s44, %s47
      %p56 = scmp.eq.s32.totalorder %s18, 1
      %p57 = por %p55, %p56
      %p58 = scmp.ne.s32.totalorder %s47, %s48
      %p59 = scmp.eq.s32.totalorder %s18, 0
      %p60 = por %p58, %p59
      %p61 = scmp.ne.s32.totalorder %s47, %s48
      %p62 = scmp.eq.s32.totalorder %s19, 1
      %p63 = por %p61, %p62
      %p65 = scmp.ne.s32.totalorder %s48, %s64
      %p66 = scmp.eq.s32.totalorder %s19, 0
      %p67 = por %p65, %p66
      %s68 = ssub.s32 %s22, %s31
      %p69 = scmp.eq.s32.totalorder %s68, 0
      %s71 = sadd.s32 %s70, 1
      %s72 = scalar_select %p69, %s70, %s71
      %p75 = pneg %p69
      %p76 = scmp.eq.s32.totalorder %s13, 1
      %p77 = por %p75, %p76
      %p78 = scmp.ne.s32.totalorder %s70, %s73
      %p79 = scmp.eq.s32.totalorder %s13, 0
      %p80 = por %p78, %p79
      %p81 = scmp.ne.s32.totalorder %s70, %s73
      %p82 = scmp.eq.s32.totalorder %s18, 1
      %p83 = por %p81, %p82
      %p84 = scmp.ne.s32.totalorder %s73, %s74
      %p85 = scmp.eq.s32.totalorder %s18, 0
      %p86 = por %p84, %p85
      %p87 = scmp.ne.s32.totalorder %s73, %s74
      %p88 = scmp.eq.s32.totalorder %s19, 1
      %p89 = por %p87, %p88
      %p91 = scmp.ne.s32.totalorder %s74, %s90
      %p92 = scmp.eq.s32.totalorder %s19, 0
      %p93 = por %p91, %p92
      %s94 = ssub.s32 %s22, %s31
      %p95 = scmp.eq.s32.totalorder %s94, 0
      %s97 = sadd.s32 %s96, 1
      %s98 = scalar_select %p95, %s96, %s97
      %p101 = pneg %p95
      %p102 = scmp.eq.s32.totalorder %s13, 1
      %p103 = por %p101, %p102
      %p104 = scmp.ne.s32.totalorder %s96, %s99
      %p105 = scmp.eq.s32.totalorder %s13, 0
      %p106 = por %p104, %p105
      %p107 = scmp.ne.s32.totalorder %s96, %s99
      %p108 = scmp.eq.s32.totalorder %s18, 1
      %p109 = por %p107, %p108
      %p110 = scmp.ne.s32.totalorder %s99, %s100
      %p111 = scmp.eq.s32.totalorder %s18, 0
      %p112 = por %p110, %p111
      %p113 = scmp.ne.s32.totalorder %s99, %s100
      %p114 = scmp.eq.s32.totalorder %s19, 1
      %p115 = por %p113, %p114
      %p117 = scmp.ne.s32.totalorder %s100, %s116
      %p118 = scmp.eq.s32.totalorder %s19, 0
      %p119 = por %p117, %p118
      %s120 = ssub.s32 %s20, %s39
      %s121 = ssub.s32 %s21, %s35
      %s122 = sor.u32 %s120, %s121
      %s123 = ssub.s32 %s22, %s31
      %s124 = sor.u32 %s122, %s123
      %p125 = scmp.eq.s32.totalorder %s124, 0
      %s127 = sadd.s32 %s126, 1
      %s128 = scalar_select %p125, %s126, %s127
      %p131 = pneg %p125
      %p132 = scmp.eq.s32.totalorder %s13, 1
      %p133 = por %p131, %p132
      %p134 = scmp.ne.s32.totalorder %s126, %s129
      %p135 = scmp.eq.s32.totalorder %s13, 0
      %p136 = por %p134, %p135
      %p137 = scmp.ne.s32.totalorder %s126, %s129
      %p138 = scmp.eq.s32.totalorder %s18, 1
      %p139 = por %p137, %p138
      %p140 = scmp.ne.s32.totalorder %s129, %s130
      %p141 = scmp.eq.s32.totalorder %s18, 0
      %p142 = por %p140, %p141
      %p143 = scmp.ne.s32.totalorder %s129, %s130
      %p144 = scmp.eq.s32.totalorder %s19, 1
      %p145 = por %p143, %p144
      %p147 = scmp.ne.s32.totalorder %s130, %s146
      %p148 = scmp.eq.s32.totalorder %s19, 0
      %p149 = por %p147, %p148
      %p150 = scmp.le.s32.totalorder 1, %s13
      %p151 = scmp.lt.s32.totalorder %s13, 3
      %p152 = pnand %p150, %p151
      %p153 = pneg %p152
      // Predicated region
      $region9: #{tpu_custom_call.1} parent=5 // pred_check
        _
      $region10: #{tpu_custom_call.1} parent=5 // pred_check_branch
        %155 = sbr.rel (%p152) target = $region12
      $region11: #{tpu_custom_call.1} parent=5 // pred_region
        %s156 = ssub.s32 %s13, 1
        // Predicated region
        $region13: #{tpu_custom_call.1} parent=11 // pred_check
          %p157 = pneg %p86
        $region14: #{tpu_custom_call.1} parent=11 // pred_check_branch
          %159 = sbr.rel (%p157) target = $region16
        $region15: #{tpu_custom_call.1} parent=11 // pred_region
          %s161 = ssub.s32 64, 64
          %162 = vsyncadd [#allocation5], %s161
          %s163 = smul.addr %s25, 64
          %s164 = scalar_lea.hbm %s1, %s163
          %s166 = sshll.u32 [#allocation4], 4
          %s167 = int_to_ptr.vmem [resolvable:$true] %s166
          %169 = dma.hbm_to_vmem [thread:$0]  %s164, 64, %s167, [#allocation5]
        $region16: #{tpu_custom_call.1} parent=11 // pred_fallthru
          _
        // Predicated region
        $region17: #{tpu_custom_call.1} parent=11 // pred_check
          %p170 = pneg %p112
        $region18: #{tpu_custom_call.1} parent=11 // pred_check_branch
          %172 = sbr.rel (%p170) target = $region20
        $region19: #{tpu_custom_call.1} parent=11 // pred_region
          %p173 = scmp.lt.s32.totalorder %s25, 0
          %s174 = scalar_select %p173, %s25, 0
          %s175 = scalar_lea.vmem %s2, %s174
        $region20: #{tpu_custom_call.1} parent=11 // pred_fallthru
          _
      $region12: #{tpu_custom_call.1} parent=5 // pred_fallthru
        _
      %p176 = scmp.lt.s32.totalorder %s13, 2
      // Predicated region
      $region21: #{tpu_custom_call.1} parent=5 // pred_check
        %p177 = pneg %p176
      $region22: #{tpu_custom_call.1} parent=5 // pred_check_branch
        %179 = sbr.rel (%p177) target = $region24
      $region23: #{tpu_custom_call.1} parent=5 // pred_region
        // Predicated region
        $region25: #{tpu_custom_call.1} parent=23 // pred_check
          %p180 = pneg %p54
        $region26: #{tpu_custom_call.1} parent=23 // pred_check_branch
          %182 = sbr.rel (%p180) target = $region28
        $region27: #{tpu_custom_call.1} parent=23 // pred_region
          %s183 = sand.u32 %s44, 1
          %s184 = scalar_lea.sflag [#allocation3], %s183
          %s185 = sand.u32 %s44, 1
          %s186 = smul.addr %s185, 8
          %s187 = scalar_lea.vmem [#allocation2], %s186
          %s188 = smul.u32 2, %s21
          %s190 = ssub.s32 128, 128
          %191 = vsyncadd %s184, %s190
          %s192 = smul.addr %s20, 2
          %s193 = sadd.s32 %s188, %s192
          %s194 = smul.addr %s193, 64
          %s195 = scalar_lea.hbm %s0, %s194
          %s197 = sshll.u32 %s187, 4
          %s198 = int_to_ptr.vmem [resolvable:$true] %s197
          %200 = dma.hbm_to_vmem [thread:$0]  %s195, 128, %s198, %s184
        $region28: #{tpu_custom_call.1} parent=23 // pred_fallthru
          _
      $region24: #{tpu_custom_call.1} parent=5 // pred_fallthru
        _
      %p201 = scmp.le.s32.totalorder 1, %s13
      %p202 = scmp.lt.s32.totalorder %s13, 3
      %p203 = pnand %p201, %p202
      %p204 = pneg %p203
      // Predicated region
      $region29: #{tpu_custom_call.1} parent=5 // pred_check
        _
      $region30: #{tpu_custom_call.1} parent=5 // pred_check_branch
        %206 = sbr.rel (%p203) target = $region32
      $region31: #{tpu_custom_call.1} parent=5 // pred_region
        %s207 = ssub.s32 %s13, 1
        %s208 = sand.u32 %s47, 1
        %s209 = scalar_lea.sflag [#allocation3], %s208
        %s210 = sand.u32 %s47, 1
        %s211 = smul.addr %s210, 8
        %s212 = scalar_lea.vmem [#allocation2], %s211
        // Predicated region
        $region33: #{tpu_custom_call.1} parent=31 // pred_check
          %p213 = pneg %p60
        $region34: #{tpu_custom_call.1} parent=31 // pred_check_branch
          %215 = sbr.rel (%p213) target = $region36
        $region35: #{tpu_custom_call.1} parent=31 // pred_region
          %216 = dma.done %s209, 128
        $region36: #{tpu_custom_call.1} parent=31 // pred_fallthru
          _
        // Predicated region
        $region37: #{tpu_custom_call.1} parent=31 // pred_check
          %p217 = pneg %p86
        $region38: #{tpu_custom_call.1} parent=31 // pred_check_branch
          %219 = sbr.rel (%p217) target = $region40
        $region39: #{tpu_custom_call.1} parent=31 // pred_region
          %220 = dma.done [#allocation5], 64
        $region40: #{tpu_custom_call.1} parent=31 // pred_fallthru
          _
        %s221 = sand.u32 %s47, 1
        %s222 = scalar_lea.sflag [#allocation3], %s221
        %s223 = sand.u32 %s47, 1
        %s224 = smul.addr %s223, 8
        %s225 = scalar_lea.vmem [#allocation2], %s224
        %p226 = pneg %p60
        %p227 = pneg %p57
        %p228 = pneg %p86
        %p229 = pneg %p83
        %p230 = scmp.lt.s32.totalorder %s25, 0
        %s231 = scalar_select %p230, %s25, 0
        %s232 = scalar_lea.vmem %s2, %s231
        %p233 = pneg %p112
        %p234 = pneg %p109
        %p235 = pneg %p142
        %p236 = pneg %p139
        %s237 = smul.u32 32, %s24
        %p238 = scmp.lt.s32.totalorder %s23, 1
        %s239 = scalar_select %p238, %s23, 1
        %p240 = scmp.lt.s32.totalorder %s237, 31
        %s241 = scalar_select %p240, %s237, 31
        %p242 = scmp.lt.s32.totalorder %s25, 0
        %s243 = scalar_select %p242, %s25, 0
        %s244 = sadd.s32 %s243, %s241
        %s245 = smul.addr %s239, 32
        %s246 = sadd.s32 %s244, %s245
        %s247 = smul.addr %s246, 8
        %s248 = scalar_lea.vmem %s3, %s247
        %s249 = smul.u32 2, %s24
        %p250 = scmp.lt.s32.totalorder %s25, 0
        %s251 = scalar_select %p250, %s25, 0
        %s252 = scalar_lea.vmem %s2, %s251
        %s253 = smul.u32 32, %s24
        %p254 = scmp.lt.s32.totalorder %s23, 1
        %s255 = scalar_select %p254, %s23, 1
        %p256 = scmp.lt.s32.totalorder %s253, 31
        %s257 = scalar_select %p256, %s253, 31
        %p258 = scmp.lt.s32.totalorder %s25, 0
        %s259 = scalar_select %p258, %s25, 0
        %s260 = sadd.s32 %s259, %s257
        %s261 = smul.addr %s255, 32
        %s262 = sadd.s32 %s260, %s261
        %s263 = smul.addr %s262, 8
        %s264 = scalar_lea.vmem %s3, %s263
        %s265 = smul.u32 32, %s24
        %v266 = vld [vmem:[%s212] sm:$0xff]
        %v267 = vld [vmem:[#allocation4] sm:$0xf]
        %v268 = vld [vmem:[%s252] sm:$0x1]
        %v270 = vlaneseq
        %v271 = vshrl.u32 %v270, 7
        %v272 = vsub.s32 0, %v271
        %v273 = vrot.slane %v268, %v272
        %v276 = vcombine.high %v266, %v266
        %278 = vxpose.xlu0.b32.start [1/16] %v266, 128
        %279 = vxpose.xlu0.b32.cont [2/16] 0.0, 128
        %280 = vxpose.xlu0.b32.cont [3/16] 0.0, 128
        %281 = vxpose.xlu0.b32.cont [4/16] 0.0, 128
        %282 = vxpose.xlu0.b32.cont [5/16] 0.0, 128
        %283 = vxpose.xlu0.b32.cont [6/16] 0.0, 128
        %284 = vxpose.xlu0.b32.cont [7/16] 0.0, 128
        %285 = vxpose.xlu0.b32.cont [8/16] 0.0, 128
        %286 = vxpose.xlu0.b32.cont [9/16] 0.0, 128
        %287 = vxpose.xlu0.b32.cont [10/16] 0.0, 128
        %288 = vxpose.xlu0.b32.cont [11/16] 0.0, 128
        %289 = vxpose.xlu0.b32.cont [12/16] 0.0, 128
        %290 = vxpose.xlu0.b32.cont [13/16] 0.0, 128
        %291 = vxpose.xlu0.b32.cont [14/16] 0.0, 128
        %292 = vxpose.xlu0.b32.cont [15/16] 0.0, 128
        %293 = vxpose.xlu0.b32.end [16/16] 0.0, 128
        %v294 = vpop.trf.xlu0
        %v295 = vpop.trf.xlu0
        %v296 = vpop.trf.xlu0
        %v297 = vpop.trf.xlu0
        %v298 = vpop.trf.xlu0
        %v299 = vpop.trf.xlu0
        %v300 = vpop.trf.xlu0
        %v301 = vpop.trf.xlu0
        %v302 = vpop.trf.xlu0
        %v303 = vpop.trf.xlu0
        %v304 = vpop.trf.xlu0
        %v305 = vpop.trf.xlu0
        %v306 = vpop.trf.xlu0
        %v307 = vpop.trf.xlu0
        %v308 = vpop.trf.xlu0
        %v309 = vpop.trf.xlu0
        %310 = vxpose.xlu0.b32.start [1/16] %v276, 128
        %311 = vxpose.xlu0.b32.cont [2/16] 0.0, 128
        %312 = vxpose.xlu0.b32.cont [3/16] 0.0, 128
        %313 = vxpose.xlu0.b32.cont [4/16] 0.0, 128
        %314 = vxpose.xlu0.b32.cont [5/16] 0.0, 128
        %315 = vxpose.xlu0.b32.cont [6/16] 0.0, 128
        %316 = vxpose.xlu0.b32.cont [7/16] 0.0, 128
        %317 = vxpose.xlu0.b32.cont [8/16] 0.0, 128
        %318 = vxpose.xlu0.b32.cont [9/16] 0.0, 128
        %319 = vxpose.xlu0.b32.cont [10/16] 0.0, 128
        %320 = vxpose.xlu0.b32.cont [11/16] 0.0, 128
        %321 = vxpose.xlu0.b32.cont [12/16] 0.0, 128
        %322 = vxpose.xlu0.b32.cont [13/16] 0.0, 128
        %323 = vxpose.xlu0.b32.cont [14/16] 0.0, 128
        %324 = vxpose.xlu0.b32.cont [15/16] 0.0, 128
        %325 = vxpose.xlu0.b32.end [16/16] 0.0, 128
        %v326 = vpop.trf.xlu0
        %v327 = vpop.trf.xlu0
        %v328 = vpop.trf.xlu0
        %v329 = vpop.trf.xlu0
        %v330 = vpop.trf.xlu0
        %v331 = vpop.trf.xlu0
        %v332 = vpop.trf.xlu0
        %v333 = vpop.trf.xlu0
        %v334 = vpop.trf.xlu0
        %v335 = vpop.trf.xlu0
        %v336 = vpop.trf.xlu0
        %v337 = vpop.trf.xlu0
        %v338 = vpop.trf.xlu0
        %v339 = vpop.trf.xlu0
        %v340 = vpop.trf.xlu0
        %v341 = vpop.trf.xlu0
        %vm342 = vcmask 31744
        %v344 = vsel %vm342, %v294, 0
        %v347 = vsel %vm342, %v295, 0
        %v350 = vsel %vm342, %v296, 0
        %v353 = vsel %vm342, %v297, 0
        %v356 = vsel %vm342, %v298, 0
        %v359 = vsel %vm342, %v299, 0
        %v362 = vsel %vm342, %v300, 0
        %v365 = vsel %vm342, %v301, 0
        %v368 = vsel %vm342, %v302, 0
        %v371 = vsel %vm342, %v303, 0
        %v374 = vsel %vm342, %v304, 0
        %v377 = vsel %vm342, %v305, 0
        %v380 = vsel %vm342, %v306, 0
        %v383 = vsel %vm342, %v307, 0
        %v386 = vsel %vm342, %v308, 0
        %v389 = vsel %vm342, %v309, 0
        %v392 = vsel %vm342, %v326, 0
        %v395 = vsel %vm342, %v327, 0
        %v398 = vsel %vm342, %v328, 0
        %v401 = vsel %vm342, %v329, 0
        %v404 = vsel %vm342, %v330, 0
        %v407 = vsel %vm342, %v331, 0
        %v410 = vsel %vm342, %v332, 0
        %v413 = vsel %vm342, %v333, 0
        %v416 = vsel %vm342, %v334, 0
        %v419 = vsel %vm342, %v335, 0
        %v422 = vsel %vm342, %v336, 0
        %v425 = vsel %vm342, %v337, 0
        %v428 = vsel %vm342, %v338, 0
        %v431 = vsel %vm342, %v339, 0
        %v434 = vsel %vm342, %v340, 0
        %v437 = vsel %vm342, %v341, 0
        %vm439 = vcmask 1043456
        %v441 = vsel %vm439, %v267, 0
        %443 = vmatprep.subr.mxu0 0.0
        %444 = vmatpush1.msra.mxu0 %v441
        %445 = vmatprep.subr.mxu0 0.0
        %446 = vmatpush1.msra.mxu0 0.0
        %447 = vmatprep.subr.mxu0 0.0
        %448 = vmatpush1.msra.mxu0 0.0
        %449 = vmatprep.subr.mxu0 0.0
        %450 = vmatpush1.msra.mxu0 0.0
        %451 = vmatprep.subr.mxu0 0.0
        %452 = vmatpush1.msra.mxu0 0.0
        %453 = vmatprep.subr.mxu0 0.0
        %454 = vmatpush1.msra.mxu0 0.0
        %455 = vmatprep.subr.mxu0 0.0
        %456 = vmatpush1.msra.mxu0 0.0
        %457 = vmatprep.subr.mxu0 0.0
        %458 = vmatpush1.msra.mxu0 0.0
        %459 = vmatprep.subr.mxu0 0.0
        %460 = vmatpush1.msra.mxu0 0.0
        %461 = vmatprep.subr.mxu0 0.0
        %462 = vmatpush1.msra.mxu0 0.0
        %463 = vmatprep.subr.mxu0 0.0
        %464 = vmatpush1.msra.mxu0 0.0
        %465 = vmatprep.subr.mxu0 0.0
        %466 = vmatpush1.msra.mxu0 0.0
        %467 = vmatprep.subr.mxu0 0.0
        %468 = vmatpush1.msra.mxu0 0.0
        %469 = vmatprep.subr.mxu0 0.0
        %470 = vmatpush1.msra.mxu0 0.0
        %471 = vmatprep.subr.mxu0 0.0
        %472 = vmatpush1.msra.mxu0 0.0
        %473 = vmatprep.subr.mxu0 0.0
        %474 = vmatpush1.msra.mxu0 0.0
        %475 = vmatprep.subr.mxu0 0.0
        %476 = vmatpush1.msra.mxu0 0.0
        %477 = vmatprep.subr.mxu0 0.0
        %478 = vmatpush1.msra.mxu0 0.0
        %479 = vmatprep.subr.mxu0 0.0
        %480 = vmatpush1.msra.mxu0 0.0
        %481 = vmatprep.subr.mxu0 0.0
        %482 = vmatpush1.msra.mxu0 0.0
        %483 = vmatprep.subr.mxu0 0.0
        %484 = vmatpush1.msra.mxu0 0.0
        %485 = vmatprep.subr.mxu0 0.0
        %486 = vmatpush1.msra.mxu0 0.0
        %487 = vmatprep.subr.mxu0 0.0
        %488 = vmatpush1.msra.mxu0 0.0
        %489 = vmatprep.subr.mxu0 0.0
        %490 = vmatpush1.msra.mxu0 0.0
        %491 = vmatprep.subr.mxu0 0.0
        %492 = vmatpush1.msra.mxu0 0.0
        %493 = vmatprep.subr.mxu0 0.0
        %494 = vmatpush1.msra.mxu0 0.0
        %495 = vmatprep.subr.mxu0 0.0
        %496 = vmatpush1.msra.mxu0 0.0
        %497 = vmatprep.subr.mxu0 0.0
        %498 = vmatpush1.msra.mxu0 0.0
        %499 = vmatprep.subr.mxu0 0.0
        %500 = vmatpush1.msra.mxu0 0.0
        %501 = vmatprep.subr.mxu0 0.0
        %502 = vmatpush1.msra.mxu0 0.0
        %503 = vmatprep.subr.mxu0 0.0
        %504 = vmatpush1.msra.mxu0 0.0
        %505 = vmatprep.subr.mxu0 0.0
        %506 = vmatpush1.msra.mxu0 0.0
        %507 = vmatprep.mubr.f32.mxu0 0.0
        %508 = vmatmul.mubr.f32.gmra.mrb[0].mxu0 %v344
        %v509 = vpop.f32.mrb[0].mxu0
        %v510 = vadd.f32 %v273, %v509
        %v511 = vpop.f32.mrb[0].mxu0
        %512 = vmatprep.mubr.f32.mxu0 0.0
        %513 = vmatmul.mubr.f32.gmra.mrb[0].mxu0 %v347
        %v514 = vpop.f32.mrb[0].mxu0
        %v515 = vadd.f32 %v273, %v514
        %v516 = vpop.f32.mrb[0].mxu0
        %517 = vmatprep.mubr.f32.mxu0 0.0
        %518 = vmatmul.mubr.f32.gmra.mrb[0].mxu0 %v350
        %v519 = vpop.f32.mrb[0].mxu0
        %v520 = vadd.f32 %v273, %v519
        %v521 = vpop.f32.mrb[0].mxu0
        %522 = vmatprep.mubr.f32.mxu0 0.0
        %523 = vmatmul.mubr.f32.gmra.mrb[0].mxu0 %v353
        %v524 = vpop.f32.mrb[0].mxu0
        %v525 = vadd.f32 %v273, %v524
        %v526 = vpop.f32.mrb[0].mxu0
        %527 = vmatprep.mubr.f32.mxu0 0.0
        %528 = vmatmul.mubr.f32.gmra.mrb[0].mxu0 %v356
        %v529 = vpop.f32.mrb[0].mxu0
        %v530 = vadd.f32 %v273, %v529
        %v531 = vpop.f32.mrb[0].mxu0
        %532 = vmatprep.mubr.f32.mxu0 0.0
        %533 = vmatmul.mubr.f32.gmra.mrb[0].mxu0 %v359
        %v534 = vpop.f32.mrb[0].mxu0
        %v535 = vadd.f32 %v273, %v534
        %v536 = vpop.f32.mrb[0].mxu0
        %537 = vmatprep.mubr.f32.mxu0 0.0
        %538 = vmatmul.mubr.f32.gmra.mrb[0].mxu0 %v362
        %v539 = vpop.f32.mrb[0].mxu0
        %v540 = vadd.f32 %v273, %v539
        %v541 = vpop.f32.mrb[0].mxu0
        %542 = vmatprep.mubr.f32.mxu0 0.0
        %543 = vmatmul.mubr.f32.gmra.mrb[0].mxu0 %v365
        %v544 = vpop.f32.mrb[0].mxu0
        %v545 = vadd.f32 %v273, %v544
        %v546 = vpop.f32.mrb[0].mxu0
        %547 = vmatprep.mubr.f32.mxu0 0.0
        %548 = vmatmul.mubr.f32.gmra.mrb[0].mxu0 %v368
        %v549 = vpop.f32.mrb[0].mxu0
        %v550 = vadd.f32 %v273, %v549
        %v551 = vpop.f32.mrb[0].mxu0
        %552 = vmatprep.mubr.f32.mxu0 0.0
        %553 = vmatmul.mubr.f32.gmra.mrb[0].mxu0 %v371
        %v554 = vpop.f32.mrb[0].mxu0
        %v555 = vadd.f32 %v273, %v554
        %v556 = vpop.f32.mrb[0].mxu0
        %557 = vmatprep.mubr.f32.mxu0 0.0
        %558 = vmatmul.mubr.f32.gmra.mrb[0].mxu0 %v374
        %v559 = vpop.f32.mrb[0].mxu0
        %v560 = vadd.f32 %v273, %v559
        %v561 = vpop.f32.mrb[0].mxu0
        %562 = vmatprep.mubr.f32.mxu0 0.0
        %563 = vmatmul.mubr.f32.gmra.mrb[0].mxu0 %v377
        %v564 = vpop.f32.mrb[0].mxu0
        %v565 = vadd.f32 %v273, %v564
        %v566 = vpop.f32.mrb[0].mxu0
        %567 = vmatprep.mubr.f32.mxu0 0.0
        %568 = vmatmul.mubr.f32.gmra.mrb[0].mxu0 %v380
        %v569 = vpop.f32.mrb[0].mxu0
        %v570 = vadd.f32 %v273, %v569
        %v571 = vpop.f32.mrb[0].mxu0
        %572 = vmatprep.mubr.f32.mxu0 0.0
        %573 = vmatmul.mubr.f32.gmra.mrb[0].mxu0 %v383
        %v574 = vpop.f32.mrb[0].mxu0
        %v575 = vadd.f32 %v273, %v574
        %v576 = vpop.f32.mrb[0].mxu0
        %577 = vmatprep.mubr.f32.mxu0 0.0
        %578 = vmatmul.mubr.f32.gmra.mrb[0].mxu0 %v386
        %v579 = vpop.f32.mrb[0].mxu0
        %v580 = vadd.f32 %v273, %v579
        %v581 = vpop.f32.mrb[0].mxu0
        %582 = vmatprep.mubr.f32.mxu0 0.0
        %583 = vmatmul.mubr.f32.gmra.mrb[0].mxu0 %v389
        %v584 = vpop.f32.mrb[0].mxu0
        %v585 = vadd.f32 %v273, %v584
        %v586 = vpop.f32.mrb[0].mxu0
        %587 = vmatprep.mubr.f32.mxu0 0.0
        %588 = vmatmul.mubr.f32.gmra.mrb[0].mxu0 %v392
        %v589 = vpop.f32.mrb[0].mxu0
        %v590 = vadd.f32 %v273, %v589
        %v591 = vpop.f32.mrb[0].mxu0
        %592 = vmatprep.mubr.f32.mxu0 0.0
        %593 = vmatmul.mubr.f32.gmra.mrb[0].mxu0 %v395
        %v594 = vpop.f32.mrb[0].mxu0
        %v595 = vadd.f32 %v273, %v594
        %v596 = vpop.f32.mrb[0].mxu0
        %597 = vmatprep.mubr.f32.mxu0 0.0
        %598 = vmatmul.mubr.f32.gmra.mrb[0].mxu0 %v398
        %v599 = vpop.f32.mrb[0].mxu0
        %v600 = vadd.f32 %v273, %v599
        %v601 = vpop.f32.mrb[0].mxu0
        %602 = vmatprep.mubr.f32.mxu0 0.0
        %603 = vmatmul.mubr.f32.gmra.mrb[0].mxu0 %v401
        %v604 = vpop.f32.mrb[0].mxu0
        %v605 = vadd.f32 %v273, %v604
        %v606 = vpop.f32.mrb[0].mxu0
        %607 = vmatprep.mubr.f32.mxu0 0.0
        %608 = vmatmul.mubr.f32.gmra.mrb[0].mxu0 %v404
        %v609 = vpop.f32.mrb[0].mxu0
        %v610 = vadd.f32 %v273, %v609
        %v611 = vpop.f32.mrb[0].mxu0
        %612 = vmatprep.mubr.f32.mxu0 0.0
        %613 = vmatmul.mubr.f32.gmra.mrb[0].mxu0 %v407
        %v614 = vpop.f32.mrb[0].mxu0
        %v615 = vadd.f32 %v273, %v614
        %v616 = vpop.f32.mrb[0].mxu0
        %617 = vmatprep.mubr.f32.mxu0 0.0
        %618 = vmatmul.mubr.f32.gmra.mrb[0].mxu0 %v410
        %v619 = vpop.f32.mrb[0].mxu0
        %v620 = vadd.f32 %v273, %v619
        %v621 = vpop.f32.mrb[0].mxu0
        %622 = vmatprep.mubr.f32.mxu0 0.0
        %623 = vmatmul.mubr.f32.gmra.mrb[0].mxu0 %v413
        %v624 = vpop.f32.mrb[0].mxu0
        %v625 = vadd.f32 %v273, %v624
        %v626 = vpop.f32.mrb[0].mxu0
        %627 = vmatprep.mubr.f32.mxu0 0.0
        %628 = vmatmul.mubr.f32.gmra.mrb[0].mxu0 %v416
        %v629 = vpop.f32.mrb[0].mxu0
        %v630 = vadd.f32 %v273, %v629
        %v631 = vpop.f32.mrb[0].mxu0
        %632 = vmatprep.mubr.f32.mxu0 0.0
        %633 = vmatmul.mubr.f32.gmra.mrb[0].mxu0 %v419
        %v634 = vpop.f32.mrb[0].mxu0
        %v635 = vadd.f32 %v273, %v634
        %v636 = vpop.f32.mrb[0].mxu0
        %637 = vmatprep.mubr.f32.mxu0 0.0
        %638 = vmatmul.mubr.f32.gmra.mrb[0].mxu0 %v422
        %v639 = vpop.f32.mrb[0].mxu0
        %v640 = vadd.f32 %v273, %v639
        %v641 = vpop.f32.mrb[0].mxu0
        %642 = vmatprep.mubr.f32.mxu0 0.0
        %643 = vmatmul.mubr.f32.gmra.mrb[0].mxu0 %v425
        %v644 = vpop.f32.mrb[0].mxu0
        %v645 = vadd.f32 %v273, %v644
        %v646 = vpop.f32.mrb[0].mxu0
        %647 = vmatprep.mubr.f32.mxu0 0.0
        %648 = vmatmul.mubr.f32.gmra.mrb[0].mxu0 %v428
        %v649 = vpop.f32.mrb[0].mxu0
        %v650 = vadd.f32 %v273, %v649
        %v651 = vpop.f32.mrb[0].mxu0
        %652 = vmatprep.mubr.f32.mxu0 0.0
        %653 = vmatmul.mubr.f32.gmra.mrb[0].mxu0 %v431
        %v654 = vpop.f32.mrb[0].mxu0
        %v655 = vadd.f32 %v273, %v654
        %v656 = vpop.f32.mrb[0].mxu0
        %657 = vmatprep.mubr.f32.mxu0 0.0
        %658 = vmatmul.mubr.f32.gmra.mrb[0].mxu0 %v434
        %v659 = vpop.f32.mrb[0].mxu0
        %v660 = vadd.f32 %v273, %v659
        %v661 = vpop.f32.mrb[0].mxu0
        %662 = vmatprep.mubr.f32.mxu0 0.0
        %663 = vmatmul.mubr.f32.gmra.mrb[0].mxu0 %v437
        %v664 = vpop.f32.mrb[0].mxu0
        %v665 = vadd.f32 %v273, %v664
        %v666 = vpop.f32.mrb[0].mxu0
        %667 = vdwg.mxu0
        %668 = vst [vmem:[%s264] sm:$0xff] %v510
        %669 = vst [vmem:[%s264 + $0x8] sm:$0xff] %v515
        %670 = vst [vmem:[%s264 + $0x10] sm:$0xff] %v520
        %671 = vst [vmem:[%s264 + $0x18] sm:$0xff] %v525
        %672 = vst [vmem:[%s264 + $0x20] sm:$0xff] %v530
        %673 = vst [vmem:[%s264 + $0x28] sm:$0xff] %v535
        %674 = vst [vmem:[%s264 + $0x30] sm:$0xff] %v540
        %675 = vst [vmem:[%s264 + $0x38] sm:$0xff] %v545
        %676 = vst [vmem:[%s264 + $0x40] sm:$0xff] %v550
        %677 = vst [vmem:[%s264 + $0x48] sm:$0xff] %v555
        %678 = vst [vmem:[%s264 + $0x50] sm:$0xff] %v560
        %679 = vst [vmem:[%s264 + $0x58] sm:$0xff] %v565
        %680 = vst [vmem:[%s264 + $0x60] sm:$0xff] %v570
        %681 = vst [vmem:[%s264 + $0x68] sm:$0xff] %v575
        %682 = vst [vmem:[%s264 + $0x70] sm:$0xff] %v580
        %683 = vst [vmem:[%s264 + $0x78] sm:$0xff] %v585
        %684 = vst [vmem:[%s264 + $0x80] sm:$0xff] %v590
        %685 = vst [vmem:[%s264 + $0x88] sm:$0xff] %v595
        %686 = vst [vmem:[%s264 + $0x90] sm:$0xff] %v600
        %687 = vst [vmem:[%s264 + $0x98] sm:$0xff] %v605
        %688 = vst [vmem:[%s264 + $0xa0] sm:$0xff] %v610
        %689 = vst [vmem:[%s264 + $0xa8] sm:$0xff] %v615
        %690 = vst [vmem:[%s264 + $0xb0] sm:$0xff] %v620
        %691 = vst [vmem:[%s264 + $0xb8] sm:$0xff] %v625
        %692 = vst [vmem:[%s264 + $0xc0] sm:$0xff] %v630
        %693 = vst [vmem:[%s264 + $0xc8] sm:$0xff] %v635
        %694 = vst [vmem:[%s264 + $0xd0] sm:$0xff] %v640
        %695 = vst [vmem:[%s264 + $0xd8] sm:$0xff] %v645
        %696 = vst [vmem:[%s264 + $0xe0] sm:$0xff] %v650
        %697 = vst [vmem:[%s264 + $0xe8] sm:$0xff] %v655
        %698 = vst [vmem:[%s264 + $0xf0] sm:$0xff] %v660
        %699 = vst [vmem:[%s264 + $0xf8] sm:$0xff] %v665
        %s700 = smul.u32 32, %s24
        %p701 = scmp.lt.s32.totalorder %s23, 1
        %s702 = scalar_select %p701, %s23, 1
        %p703 = scmp.lt.s32.totalorder %s700, 31
        %s704 = scalar_select %p703, %s700, 31
        %p705 = scmp.lt.s32.totalorder %s25, 0
        %s706 = scalar_select %p705, %s25, 0
        %s707 = sadd.s32 %s706, %s704
        %s708 = smul.addr %s702, 32
        %s709 = sadd.s32 %s707, %s708
        %s710 = smul.addr %s709, 8
        %s711 = scalar_lea.vmem %s3, %s710
        // Predicated region
        $region41: #{tpu_custom_call.1} parent=31 // pred_check
          %p712 = pneg %p139
        $region42: #{tpu_custom_call.1} parent=31 // pred_check_branch
          %714 = sbr.rel (%p712) target = $region44
        $region43: #{tpu_custom_call.1} parent=31 // pred_region
          %s715 = smul.u32 32, %s24
        $region44: #{tpu_custom_call.1} parent=31 // pred_fallthru
          _
      $region32: #{tpu_custom_call.1} parent=5 // pred_fallthru
        _
      %p716 = scmp.le.s32.totalorder 2, %s13
      // Predicated region
      $region45: #{tpu_custom_call.1} parent=5 // pred_check
        %p717 = pneg %p716
      $region46: #{tpu_custom_call.1} parent=5 // pred_check_branch
        %719 = sbr.rel (%p717) target = $region48
      $region47: #{tpu_custom_call.1} parent=5 // pred_region
        %s720 = ssub.s32 %s13, 2
        // Predicated region
        $region49: #{tpu_custom_call.1} parent=47 // pred_check
          %p721 = pneg %p145
        $region50: #{tpu_custom_call.1} parent=47 // pred_check_branch
          %723 = sbr.rel (%p721) target = $region52
        $region51: #{tpu_custom_call.1} parent=47 // pred_region
          %s724 = smul.u32 32, %s27
          %p725 = scmp.lt.s32.totalorder %s26, 1
          %s726 = scalar_select %p725, %s26, 1
          %p727 = scmp.lt.s32.totalorder %s724, 31
          %s728 = scalar_select %p727, %s724, 31
          %p729 = scmp.lt.s32.totalorder %s28, 0
          %s730 = scalar_select %p729, %s28, 0
          %s731 = sadd.s32 %s730, %s728
          %s732 = smul.addr %s726, 32
          %s733 = sadd.s32 %s731, %s732
          %s734 = smul.addr %s733, 8
          %s735 = scalar_lea.vmem %s3, %s734
        $region52: #{tpu_custom_call.1} parent=47 // pred_fallthru
          _
      $region48: #{tpu_custom_call.1} parent=5 // pred_fallthru
        _
    $region6: #{tpu_custom_call.1} parent=1 // loop_footer
      %s17 = sadd.s32 1, %s13
    $region7: #{tpu_custom_call.1} parent=1 // loop_footer_branch
      %12 = sbr.rel target = $region3
    $region8: #{tpu_custom_call.1} parent=1 // loop_exit
      _
    %736 = vsyncpa [#allocation3], 1
    %s737 = scalar_lea.sflag [#allocation3], 1
    %738 = vsyncpa %s737, 1
    %739 = vsyncpa [#allocation5], 1

</llo_original>
